<compile_context>
chip_gen: v7x
topology: tpu7x:2x2x1
jax: 0.10.0
libtpu: 0.0.40
codegen_flags: <defaults>
</compile_context>

<pallas_src>
import jax
import jax.numpy as jnp
from jax.experimental import pallas as pl
from jax.experimental.pallas import tpu as pltpu


def _add_mean_kernel(mean_ref, x_ref, o_ref):
    # mean_ref: (1, tile_d) VMEM tile, x_ref/o_ref: (tile_b, tile_d)
    # Broadcast-add over the batch (sublane) axis; mem-bound, VPU has plenty of slack.
    o_ref[...] = x_ref[...] + mean_ref[...]


def _num_tensorcores():
    """Best-effort TensorCore count per chip (v5e/v6e: 1, v7x: 2)."""
    try:
        dev = jax.devices()[0]
    except Exception:
        return 1
    n = getattr(dev, "num_cores", None)
    if isinstance(n, int) and n > 0:
        return n
    kind = str(getattr(dev, "device_kind", "")).lower()
    if "v7" in kind:
        return 2
    return 1


def _choose_tiles(B, D_pad, dtype_bytes, num_cores, max_tile_bytes=8 * 1024 * 1024):
    """Pick (tile_b, tile_d) for a mem-bound streaming broadcast-add.

    Budget (bytes, per tile): x + out, each double-buffered => ~4 * max_tile_bytes
    of VMEM, which stays well under the 48 MiB scoped limit requested below.
    """
    # Sublane rounding: sub-32-bit dtypes pack along sublanes.
    row_mult = max(8, 32 // max(1, dtype_bytes))  # 8 (f32), 16 (bf16), 32 (int8/fp8)
    row_bytes = D_pad * dtype_bytes

    if row_mult * row_bytes <= max_tile_bytes:
        # Full-row tiles: fully contiguous HBM DMAs, single lane-axis grid step,
        # est_mean stays resident for the whole kernel.
        tile_d = D_pad
    else:
        # Truly enormous rows: split the lane axis (multiple of 128).
        tile_d = max(128, (max_tile_bytes // (row_mult * dtype_bytes)) // 128 * 128)

    rows_budget = max(1, max_tile_bytes // (tile_d * dtype_bytes))
    if B <= rows_budget:
        tile_b = B  # full batch extent: always a legal block shape
    else:
        tile_b = max(row_mult, (rows_budget // row_mult) * row_mult)

    # Only split the batch axis when there are multiple TensorCores (v7x).
    # On single-TC v5e/v6e extra grid steps are pure per-step overhead.
    if num_cores > 1 and B >= 2 * num_cores * row_mult:
        min_steps = 2 * num_cores  # keep >= 2 steps per core for the megacore split
        per_step = -(-B // min_steps)
        per_step = -(-per_step // row_mult) * row_mult
        tile_b = min(tile_b, max(row_mult, per_step))

    return tile_b, tile_d


def generator_mu_forward(est_mean, x, *, donate_x=False):
    """est_mean: (data_dim,), x: (..., data_dim) -> est_mean + x."""
    D = est_mean.shape[-1]
    assert x.shape[-1] == D, "trailing dim of x must equal data_dim"
    orig_shape = x.shape

    # Match PyTorch broadcasting dtype promotion (e.g. bf16 x + f32 param -> f32).
    out_dtype = jnp.result_type(est_mean.dtype, x.dtype)

    x2 = x.reshape(-1, D).astype(out_dtype)       # glue reshape/cast in plain JAX
    B = x2.shape[0]
    mean2d = est_mean.reshape(1, D).astype(out_dtype)

    # Pad the lane axis to a multiple of 128: unmasked lane-dense stores and a
    # bounded VMEM footprint even for wide, unaligned data_dim.
    D_pad = ((D + 127) // 128) * 128
    padded = D_pad != D
    if padded:
        x2 = jnp.pad(x2, ((0, 0), (0, D_pad - D)))
        mean2d = jnp.pad(mean2d, ((0, 0), (0, D_pad - D)))
        donate_x = False  # padded copy: aliasing the original x no longer saves anything

    dtype_bytes = jnp.dtype(out_dtype).itemsize
    tile_b, tile_d = _choose_tiles(B, D_pad, dtype_bytes, _num_tensorcores())
    grid = (pl.cdiv(B, tile_b), pl.cdiv(D_pad, tile_d))

    out = pl.pallas_call(
        _add_mean_kernel,
        out_shape=jax.ShapeDtypeStruct((B, D_pad), out_dtype),
        grid=grid,
        in_specs=[
            # est_mean: same (1, tile_d) block for every batch step (resident in VMEM).
            pl.BlockSpec((1, tile_d), lambda i, j: (0, j)),
            # x: one (tile_b, tile_d) tile per grid step.
            pl.BlockSpec((tile_b, tile_d), lambda i, j: (i, j)),
        ],
        out_specs=pl.BlockSpec((tile_b, tile_d), lambda i, j: (i, j)),
        compiler_params=pltpu.CompilerParams(
            # TODO(synk): if "parallel" does not actually shard the batch axis
            # across v7x's 2 TensorCores, switch axis 0 to pltpu.CORE_PARALLEL.
            dimension_semantics=("parallel", "parallel"),
            vmem_limit_bytes=48 * 1024 * 1024,
        ),
        # Alias x -> out only when the caller is allowed to donate x (saves the
        # output HBM allocation; bandwidth is unchanged).
        input_output_aliases=({1: 0} if donate_x else {}),
    )(mean2d, x2)

    if padded:
        out = out[:, :D]
    return out.reshape(orig_shape[:-1] + (D,))


if __name__ == "__main__":
    key = jax.random.PRNGKey(0)
    k_x, k_m, k_x2 = jax.random.split(key, 3)

    # Small shapes consistent with the module: batch=16, data_dim=128.
    B, D = 16, 128
    x = jax.random.normal(k_x, (B, D), dtype=jnp.float32)
    # PyTorch inits est_mean to zeros; use a deterministic non-zero value here
    # so the broadcast-add is actually exercised (synthetic parameter).
    est_mean = jax.random.normal(k_m, (D,), dtype=jnp.float32) * 0.1

    out = jax.block_until_ready(generator_mu_forward(est_mean, x))
    ref = est_mean[None, :] + x
    assert out.shape == (B, D)
    assert jnp.allclose(out, ref, atol=1e-6), "mismatch vs reference (aligned D)"

    # Non-128-aligned data_dim exercises the pad-to-128 path.
    B2, D2 = 8, 100
    x_u = jax.random.normal(k_x2, (B2, D2), dtype=jnp.float32)
    est_mean_u = jnp.arange(D2, dtype=jnp.float32) * 0.01
    out_u = jax.block_until_ready(generator_mu_forward(est_mean_u, x_u))
    assert out_u.shape == (B2, D2)
    assert jnp.allclose(out_u, est_mean_u[None, :] + x_u, atol=1e-6), "mismatch (padded D)"

    print("KERNEL_OK")
</pallas_src>

<mosaic_0001>
module attributes {stable_mosaic.version = 11 : i64} {
  func.func @_add_mean_kernel(%arg0: i32, %arg1: i32, %arg2: memref<1x128xf32, #tpu.memory_space<vmem>>, %arg3: memref<16x128xf32, #tpu.memory_space<vmem>>, %arg4: memref<16x128xf32, #tpu.memory_space<vmem>>) attributes {dimension_semantics = [#tpu.dimension_semantics<parallel>, #tpu.dimension_semantics<parallel>], iteration_bounds = array<i64: 1, 1>, scalar_prefetch = 0 : i64, scratch_operands = 0 : i64, tpu.core_type = #tpu.core_type<tc>, window_params = [{transform_indices = @transform_0, window_bounds = array<i64: 1, 128>}, {transform_indices = @transform_1, window_bounds = array<i64: 16, 128>}, {transform_indices = @transform_2, window_bounds = array<i64: 16, 128>}]} {
    %c0 = arith.constant 0 : index
    %c0_0 = arith.constant 0 : index
    %0 = vector.load %arg3[%c0, %c0_0] : memref<16x128xf32, #tpu.memory_space<vmem>>, vector<16x128xf32>
    %c0_1 = arith.constant 0 : index
    %c0_2 = arith.constant 0 : index
    %1 = vector.load %arg2[%c0_1, %c0_2] : memref<1x128xf32, #tpu.memory_space<vmem>>, vector<1x128xf32>
    %2 = vector.broadcast %1 : vector<1x128xf32> to vector<16x128xf32>
    %3 = arith.addf %0, %2 : vector<16x128xf32>
    %c0_3 = arith.constant 0 : index
    %c0_4 = arith.constant 0 : index
    %4 = vector.load %arg4[%c0_3, %c0_4] : memref<16x128xf32, #tpu.memory_space<vmem>>, vector<16x128xf32>
    tpu.vector_store %arg4[%c0_3, %c0_4], %3 {strides = array<i32>} : memref<16x128xf32, #tpu.memory_space<vmem>>, vector<16x128xf32>,
    return
  }
  func.func @transform_0(%arg0: i32, %arg1: i32) -> (i32, i32) {
    %c0_i32 = arith.constant 0 : i32
    %c0_i32_0 = arith.constant 0 : i32
    return %c0_i32, %arg1 : i32, i32
  }
  func.func @transform_1(%arg0: i32, %arg1: i32) -> (i32, i32) {
    %c0_i32 = arith.constant 0 : i32
    return %arg0, %arg1 : i32, i32
  }
  func.func @transform_2(%arg0: i32, %arg1: i32) -> (i32, i32) {
    %c0_i32 = arith.constant 0 : i32
    return %arg0, %arg1 : i32, i32
  }
}

</mosaic_0001>

<llo_original>
// kernel: tpu_custom_call.1
$region0: #{tpu_custom_call.1}
  #allocation0 [shape = 'u32[]', space=smem, size = 0x4, offset = 0x4, fixed_abs, tag = 'smem constant byte address 0x4 - core index']
  #allocation1 [shape = 'u32[144,128]{1,0:T(1,128)}', space=vmem, size = 0x12000, scoped, tag = 'internal scratch']
  %s0 = inlined_call_operand.hbm [shape: f32[1,128], index: 0, kind: input, shape index: {}]
  %s1 = inlined_call_operand.hbm [shape: f32[16,128], index: 1, kind: input, shape index: {}]
  %s2 = inlined_call_operand.hbm [shape: f32[16,128], index: 2, kind: output, shape index: {}]
  %s3 = sld [smem:[#allocation0]]
  $region26: #{tpu_custom_call.1} parent=0
    _
  %s5 = ssub.s32 1, %s3
  %s6 = scalar_select 0, %s5, %s3
  $region1: #{tpu_custom_call.1} parent=0
    #allocation2 [shape = 'u8[512]{0}', space=vmem, size = 0x400, scoped, tag = 'input window, operand 0, single buffered']
    #allocation3 [shape = 's32[1]{0}', space=sflag, size = 0x4, scoped, tag = 'scoped memory for tpu_custom_call.1']
    #allocation4 [shape = 's32[1]{0}', space=sflag, size = 0x4, scoped, tag = 'scoped memory for tpu_custom_call.1']
    #allocation5 [shape = 'u8[8192]{0}', space=vmem, size = 0x2000, scoped, tag = 'input window, operand 1, single buffered']
    #allocation6 [shape = 's32[1]{0}', space=sflag, size = 0x4, scoped, tag = 'scoped memory for tpu_custom_call.1']
    #allocation7 [shape = 'u8[8192]{0}', space=vmem, size = 0x2000, scoped, tag = 'output window, operand 0, single buffered']
    %7 = vsyncpa [#allocation3], 0
    %8 = vsyncpa [#allocation6], 0
    %9 = vsyncpa [#allocation4], 0
    // Predicated region
    $region2: #{tpu_custom_call.1} parent=1 // pred_check
      _
    $region3: #{tpu_custom_call.1} parent=1 // pred_check_branch
      %11 = sbr.rel (0) target = $region5
    $region4: #{tpu_custom_call.1} parent=1 // pred_region
      %s13 = ssub.s32 16, 16
      %14 = vsyncadd [#allocation3], %s13
      %s16 = sshll.u32 [#allocation2], 4
      %s17 = int_to_ptr.vmem [resolvable:$true] %s16
      %19 = dma.hbm_to_vmem [thread:$0]  %s0, 16, %s17, [#allocation3]
    $region5: #{tpu_custom_call.1} parent=1 // pred_fallthru
      _
    // Predicated region
    $region6: #{tpu_custom_call.1} parent=1 // pred_check
      _
    $region7: #{tpu_custom_call.1} parent=1 // pred_check_branch
      %21 = sbr.rel (0) target = $region9
    $region8: #{tpu_custom_call.1} parent=1 // pred_region
      %s23 = ssub.s32 256, 256
      %24 = vsyncadd [#allocation6], %s23
      %s25 = sshll.u32 [#allocation5], 4
      %s26 = int_to_ptr.vmem [resolvable:$true] %s25
      %31 = dma.hbm_to_vmem [thread:$0]  %s1, 256, %s26, [#allocation6], 128, 128, 8
    $region9: #{tpu_custom_call.1} parent=1 // pred_fallthru
      _
    // Predicated region
    $region10: #{tpu_custom_call.1} parent=1 // pred_check
      _
    $region11: #{tpu_custom_call.1} parent=1 // pred_check_branch
      %33 = sbr.rel (0) target = $region13
    $region12: #{tpu_custom_call.1} parent=1 // pred_region
      %34 = dma.done [#allocation3], 16
    $region13: #{tpu_custom_call.1} parent=1 // pred_fallthru
      _
    // Predicated region
    $region14: #{tpu_custom_call.1} parent=1 // pred_check
      _
    $region15: #{tpu_custom_call.1} parent=1 // pred_check_branch
      %36 = sbr.rel (0) target = $region17
    $region16: #{tpu_custom_call.1} parent=1 // pred_region
      %37 = dma.done [#allocation6], 256
    $region17: #{tpu_custom_call.1} parent=1 // pred_fallthru
      _
    %v38 = vld [vmem:[#allocation5] sm:$0xff]
    %v39 = vld [vmem:[#allocation5 + $0x8] sm:$0xff]
    %v40 = vld [vmem:[#allocation2] sm:$0x1]
    %v42 = vlaneseq
    %v43 = vshrl.u32 %v42, 7
    %v44 = vsub.s32 0, %v43
    %v45 = vrot.slane %v40, %v44
    %v47 = vadd.f32 %v38, %v45
    %v48 = vadd.f32 %v39, %v45
    %49 = vst [vmem:[#allocation7] sm:$0xff] %v47
    %50 = vst [vmem:[#allocation7 + $0x8] sm:$0xff] %v48
    // Predicated region
    $region18: #{tpu_custom_call.1} parent=1 // pred_check
      _
    $region19: #{tpu_custom_call.1} parent=1 // pred_check_branch
      %52 = sbr.rel (0) target = $region21
    $region20: #{tpu_custom_call.1} parent=1 // pred_region
      %s54 = ssub.s32 256, 256
      %55 = vsyncadd [#allocation4], %s54
      %s56 = sshll.u32 [#allocation7], 4
      %s57 = int_to_ptr.vmem [resolvable:$true] %s56
      %62 = dma.vmem_to_hbm [thread:$0]  %s57, 256, %s2, [#allocation4], 128, 128, 8
    $region21: #{tpu_custom_call.1} parent=1 // pred_fallthru
      _
    // Predicated region
    $region22: #{tpu_custom_call.1} parent=1 // pred_check
      _
    $region23: #{tpu_custom_call.1} parent=1 // pred_check_branch
      %64 = sbr.rel (0) target = $region25
    $region24: #{tpu_custom_call.1} parent=1 // pred_region
      %65 = dma.done [#allocation4], 256
    $region25: #{tpu_custom_call.1} parent=1 // pred_fallthru
      _
    %66 = vsyncpa [#allocation3], 1
    %67 = vsyncpa [#allocation6], 1
    %68 = vsyncpa [#allocation4], 1

</llo_original>
